<compile_context>
chip_gen: v7x
topology: tpu7x:2x2x1
jax: 0.10.0
libtpu: 0.0.40
codegen_flags: <defaults>
</compile_context>

<pallas_src>
import functools

import jax
import jax.numpy as jnp
from jax.experimental import pallas as pl
from jax.experimental.pallas import tpu as pltpu


def value_net_kernel(x_ref, w1_ref, w23_ref, wv_ref, b123_ref, bv_ref, out_ref,
                     *, bf16_relu):
    # Activations feed the MXU in bf16, accumulation in f32.
    x = x_ref[...].astype(jnp.bfloat16)

    def relu_to_bf16(h):
        if bf16_relu:
            # relu(cast(x)) == cast(relu(x)); bf16 max halves VALU vreg traffic.
            return jnp.maximum(h.astype(jnp.bfloat16), 0.0)
        return jnp.maximum(h, 0.0).astype(jnp.bfloat16)

    # fc1 + relu (K = D_in is tiny: <2% of FLOPs, intentionally left unpadded).
    h = jnp.dot(x, w1_ref[...], preferred_element_type=jnp.float32) + b123_ref[0:1, :]
    h = relu_to_bf16(h)
    # fc2 + relu
    h = jnp.dot(h, w23_ref[0, :, :], preferred_element_type=jnp.float32) + b123_ref[1:2, :]
    h = relu_to_bf16(h)
    # fc3 + relu (keep f32: feeds the f32 VPU head)
    h = jnp.dot(h, w23_ref[1, :, :], preferred_element_type=jnp.float32) + b123_ref[2:3, :]
    h = jnp.maximum(h, 0.0)

    # v head (output dim 1): VPU multiply + lane reduction instead of an N=1 MXU
    # pass. bv comes in as an SMEM scalar.
    v = jnp.sum(h * wv_ref[...], axis=-1, keepdims=True) + bv_ref[0, 0]   # [TB, 1] f32
    # Store lane-dense: relayout [TB, 1] -> [1, TB] so the output store is
    # unmasked full-lane vst (biggest fixed-cost lever per measurement).
    out_ref[...] = v.reshape(out_ref.shape).astype(out_ref.dtype)


def _bf16_valu_supported():
    """v6e / v7x have bf16 VALUs; v5e and older do not."""
    try:
        kind = jax.devices()[0].device_kind.lower()
    except Exception:
        return True
    return not any(tag in kind for tag in ("v2", "v3", "v4", "v5"))


def _select_tile_b(B, tb_max):
    """Batch tile: big tiles amortize ~600-cycle per-step overhead, multiples of
    128 keep the MXU M-dim full, and large batches are split into >= 2 grid
    steps so both TensorCores on v7x get work."""
    if B <= 32:
        # Genuinely tiny batch: one 8-row-aligned (f32 sublane) tile.
        return max(8, pl.cdiv(B, 8) * 8)
    if B <= 256:
        # Moderate batch: 128 keeps the MXU M-dim full (and gives 2 steps at B>128).
        return 128
    b_pad = pl.cdiv(B, 128) * 128
    half = max(128, (b_pad // 2) // 128 * 128)
    return min(tb_max, half)


def value_network_forward(state, params, *, tb=1024):
    """state: [B, D_in] float32. params: packed dict (see init_params). Returns [B, 1]."""
    B, D_in = state.shape
    w1, w23, wv, b123, bv = (params["w1"], params["w23"], params["wv"],
                             params["b123"], params["bv"])
    H = w1.shape[1]

    TB = _select_tile_b(B, tb)
    B_pad = pl.cdiv(B, TB) * TB
    if B_pad != B:
        state = jnp.pad(state, ((0, B_pad - B), (0, 0)))
    G = B_pad // TB

    kernel = functools.partial(value_net_kernel, bf16_relu=_bf16_valu_supported())

    out = pl.pallas_call(
        kernel,
        out_shape=jax.ShapeDtypeStruct((G, TB), jnp.float32),
        grid=(G,),
        in_specs=[
            pl.BlockSpec((TB, D_in), lambda i: (i, 0)),        # x: tiled over batch
            pl.BlockSpec((D_in, H), lambda i: (0, 0)),         # w1: VMEM-resident
            pl.BlockSpec((2, H, H), lambda i: (0, 0, 0)),      # w2/w3 packed: resident
            pl.BlockSpec((1, H), lambda i: (0, 0)),            # wv row (f32): resident
            pl.BlockSpec((3, H), lambda i: (0, 0)),            # b1/b2/b3 packed: resident
            pl.BlockSpec(memory_space=pltpu.MemorySpace.SMEM),  # bv scalar in SMEM
        ],
        out_specs=pl.BlockSpec((1, TB), lambda i: (i, 0)),     # lane-dense output tile
        compiler_params=pltpu.CompilerParams(
            dimension_semantics=("parallel",),
        ),
    )(state, w1, w23, wv, b123, bv)

    # (G, TB) lane-dense slab -> [B, 1] in original batch order.
    return out.reshape(B_pad, 1)[:B]


def xavier_uniform(key, fan_in, fan_out):
    bound = jnp.sqrt(6.0 / (fan_in + fan_out))
    # Stored as [in, out] (transpose of PyTorch's [out, in]); distribution identical.
    return jax.random.uniform(key, (fan_in, fan_out), dtype=jnp.float32,
                              minval=-bound, maxval=bound)


def init_params(key, input_dim, hidden=256):
    """Packed parameter layout (assumes fc1_dims == fc2_dims == fc3_dims == hidden)."""
    k1, k2, k3, k4 = jax.random.split(key, 4)
    w1 = xavier_uniform(k1, input_dim, hidden)
    w2 = xavier_uniform(k2, hidden, hidden)
    w3 = xavier_uniform(k3, hidden, hidden)
    wv = xavier_uniform(k4, hidden, 1)
    return {
        # MXU weights in bf16 (intentional precision change vs f32 PyTorch);
        # biases and the tiny head row stay f32.
        "w1": w1.astype(jnp.bfloat16),
        "w23": jnp.stack([w2, w3], axis=0).astype(jnp.bfloat16),   # [2, H, H]
        "wv": wv.T,                                                # [1, H] f32 row
        "b123": jnp.zeros((3, hidden), jnp.float32),
        "bv": jnp.zeros((1, 1), jnp.float32),
    }


def reference_forward(state, p):
    """jnp reference mirroring the kernel's precision (bf16 MXU inputs, f32 accum)."""
    x = state.astype(jnp.bfloat16)
    b = p["b123"]
    h = jnp.dot(x, p["w1"], preferred_element_type=jnp.float32) + b[0:1, :]
    h = jnp.maximum(h, 0.0).astype(jnp.bfloat16)
    h = jnp.dot(h, p["w23"][0], preferred_element_type=jnp.float32) + b[1:2, :]
    h = jnp.maximum(h, 0.0).astype(jnp.bfloat16)
    h = jnp.dot(h, p["w23"][1], preferred_element_type=jnp.float32) + b[2:3, :]
    h = jnp.maximum(h, 0.0)
    return jnp.sum(h * p["wv"], axis=-1, keepdims=True) + p["bv"][0, 0]


if __name__ == "__main__":
    key = jax.random.PRNGKey(0)
    k_param, k_state = jax.random.split(key)

    batch = 2
    input_dim = 8  # input_dims = (8,)
    params = init_params(k_param, input_dim)
    state = jax.random.normal(k_state, (batch, input_dim), dtype=jnp.float32)

    v = value_network_forward(state, params)
    v = jax.block_until_ready(v)

    v_ref = reference_forward(state, params)
    assert v.shape == (batch, 1)
    assert jnp.allclose(v, v_ref, atol=1e-2, rtol=1e-2), (v, v_ref)

    print("KERNEL_OK")
</pallas_src>

<mosaic_0001>
module attributes {stable_mosaic.version = 11 : i64} {
  func.func @value_net_kernel(%arg0: i32, %arg1: memref<8x8xf32, #tpu.memory_space<vmem>>, %arg2: memref<8x256xbf16, #tpu.memory_space<vmem>>, %arg3: memref<2x256x256xbf16, #tpu.memory_space<vmem>>, %arg4: memref<1x256xf32, #tpu.memory_space<vmem>>, %arg5: memref<3x256xf32, #tpu.memory_space<vmem>>, %arg6: memref<1x1xf32, #tpu.memory_space<smem>>, %arg7: memref<1x8xf32, #tpu.memory_space<vmem>>) attributes {dimension_semantics = [#tpu.dimension_semantics<parallel>], iteration_bounds = array<i64: 1>, scalar_prefetch = 0 : i64, scratch_operands = 0 : i64, tpu.core_type = #tpu.core_type<tc>, window_params = [{transform_indices = @transform_0, window_bounds = array<i64: 8, 8>}, {pipeline_mode = #tpu.pipeline_mode<synchronous>, transform_indices = @transform_1, window_bounds = array<i64: 8, 256>}, {pipeline_mode = #tpu.pipeline_mode<synchronous>, transform_indices = @transform_2, window_bounds = array<i64: 2, 256, 256>}, {pipeline_mode = #tpu.pipeline_mode<synchronous>, transform_indices = @transform_3, window_bounds = array<i64: 1, 256>}, {pipeline_mode = #tpu.pipeline_mode<synchronous>, transform_indices = @transform_4, window_bounds = array<i64: 3, 256>}, {transform_indices = @transform_5, window_bounds = array<i64: 1, 1>}, {transform_indices = @transform_6, window_bounds = array<i64: 1, 8>}]} {
    %c0 = arith.constant 0 : index
    %c0_0 = arith.constant 0 : index
    %0 = vector.load %arg1[%c0, %c0_0] : memref<8x8xf32, #tpu.memory_space<vmem>>, vector<8x8xf32>
    %1 = arith.truncf %0 : vector<8x8xf32> to vector<8x8xbf16>
    %c0_1 = arith.constant 0 : index
    %c0_2 = arith.constant 0 : index
    %2 = vector.load %arg2[%c0_1, %c0_2] : memref<8x256xbf16, #tpu.memory_space<vmem>>, vector<8x256xbf16>
    %cst = arith.constant dense<0.000000e+00> : vector<8x256xf32>
    %3 = tpu.matmul %1, %2, %cst {dimension_numbers = #tpu.dot_dimension_numbers<[1], [0], [0], [1], [0, 0, 1, 1], [], []>} : vector<8x8xbf16>, vector<8x256xbf16>, vector<8x256xf32> -> vector<8x256xf32>
    %c0_3 = arith.constant 0 : index
    %c0_4 = arith.constant 0 : index
    %4 = vector.load %arg5[%c0_3, %c0_4] : memref<3x256xf32, #tpu.memory_space<vmem>>, vector<1x256xf32>
    %5 = vector.broadcast %4 : vector<1x256xf32> to vector<8x256xf32>
    %6 = arith.addf %3, %5 : vector<8x256xf32>
    %7 = arith.truncf %6 : vector<8x256xf32> to vector<8x256xbf16>
    %cst_5 = arith.constant 0.000000e+00 : bf16
    %8 = vector.broadcast %cst_5 : bf16 to vector<8x256xbf16>
    %9 = arith.maximumf %7, %8 : vector<8x256xbf16>
    %c0_6 = arith.constant 0 : index
    %c0_7 = arith.constant 0 : index
    %c0_8 = arith.constant 0 : index
    %10 = vector.load %arg3[%c0_6, %c0_7, %c0_8] : memref<2x256x256xbf16, #tpu.memory_space<vmem>>, vector<1x256x256xbf16>
    %11 = vector.shape_cast %10 : vector<1x256x256xbf16> to vector<256x256xbf16>
    %cst_9 = arith.constant dense<0.000000e+00> : vector<8x256xf32>
    %12 = tpu.matmul %9, %11, %cst_9 {dimension_numbers = #tpu.dot_dimension_numbers<[1], [0], [0], [1], [0, 0, 1, 1], [], []>} : vector<8x256xbf16>, vector<256x256xbf16>, vector<8x256xf32> -> vector<8x256xf32>
    %c1 = arith.constant 1 : index
    %c0_10 = arith.constant 0 : index
    %13 = vector.load %arg5[%c1, %c0_10] : memref<3x256xf32, #tpu.memory_space<vmem>>, vector<1x256xf32>
    %14 = vector.broadcast %13 : vector<1x256xf32> to vector<8x256xf32>
    %15 = arith.addf %12, %14 : vector<8x256xf32>
    %16 = arith.truncf %15 : vector<8x256xf32> to vector<8x256xbf16>
    %cst_11 = arith.constant 0.000000e+00 : bf16
    %17 = vector.broadcast %cst_11 : bf16 to vector<8x256xbf16>
    %18 = arith.maximumf %16, %17 : vector<8x256xbf16>
    %c1_12 = arith.constant 1 : index
    %c0_13 = arith.constant 0 : index
    %c0_14 = arith.constant 0 : index
    %19 = vector.load %arg3[%c1_12, %c0_13, %c0_14] : memref<2x256x256xbf16, #tpu.memory_space<vmem>>, vector<1x256x256xbf16>
    %20 = vector.shape_cast %19 : vector<1x256x256xbf16> to vector<256x256xbf16>
    %cst_15 = arith.constant dense<0.000000e+00> : vector<8x256xf32>
    %21 = tpu.matmul %18, %20, %cst_15 {dimension_numbers = #tpu.dot_dimension_numbers<[1], [0], [0], [1], [0, 0, 1, 1], [], []>} : vector<8x256xbf16>, vector<256x256xbf16>, vector<8x256xf32> -> vector<8x256xf32>
    %c2 = arith.constant 2 : index
    %c0_16 = arith.constant 0 : index
    %22 = vector.load %arg5[%c2, %c0_16] : memref<3x256xf32, #tpu.memory_space<vmem>>, vector<1x256xf32>
    %23 = vector.broadcast %22 : vector<1x256xf32> to vector<8x256xf32>
    %24 = arith.addf %21, %23 : vector<8x256xf32>
    %cst_17 = arith.constant 0.000000e+00 : f32
    %25 = vector.broadcast %cst_17 : f32 to vector<8x256xf32>
    %26 = arith.maximumf %24, %25 : vector<8x256xf32>
    %c0_18 = arith.constant 0 : index
    %c0_19 = arith.constant 0 : index
    %27 = vector.load %arg4[%c0_18, %c0_19] : memref<1x256xf32, #tpu.memory_space<vmem>>, vector<1x256xf32>
    %28 = vector.broadcast %27 : vector<1x256xf32> to vector<8x256xf32>
    %29 = arith.mulf %26, %28 : vector<8x256xf32>
    %cst_20 = arith.constant dense<0.000000e+00> : vector<8xf32>
    %30 = vector.multi_reduction <add>, %29, %cst_20 [1] : vector<8x256xf32> to vector<8xf32>
    %31 = vector.shape_cast %30 : vector<8xf32> to vector<8x1xf32>
    %c0_21 = arith.constant 0 : index
    %c0_22 = arith.constant 0 : index
    %32 = memref.load %arg6[%c0_21, %c0_22] : memref<1x1xf32, #tpu.memory_space<smem>>
    %33 = vector.broadcast %32 : f32 to vector<8x1xf32>
    %34 = arith.addf %31, %33 : vector<8x1xf32>
    %35 = vector.shape_cast %34 : vector<8x1xf32> to vector<1x8xf32>
    %c0_23 = arith.constant 0 : index
    %c0_24 = arith.constant 0 : index
    %36 = vector.load %arg7[%c0_23, %c0_24] : memref<1x8xf32, #tpu.memory_space<vmem>>, vector<1x8xf32>
    tpu.vector_store %arg7[%c0_23, %c0_24], %35 {strides = array<i32>} : memref<1x8xf32, #tpu.memory_space<vmem>>, vector<1x8xf32>,
    return
  }
  func.func @transform_0(%arg0: i32) -> (i32, i32) {
    %c0_i32 = arith.constant 0 : i32
    %c0_i32_0 = arith.constant 0 : i32
    return %arg0, %c0_i32 : i32, i32
  }
  func.func @transform_1(%arg0: i32) -> (i32, i32) {
    %c0_i32 = arith.constant 0 : i32
    %c0_i32_0 = arith.constant 0 : i32
    %c0_i32_1 = arith.constant 0 : i32
    return %c0_i32, %c0_i32_0 : i32, i32
  }
  func.func @transform_2(%arg0: i32) -> (i32, i32, i32) {
    %c0_i32 = arith.constant 0 : i32
    %c0_i32_0 = arith.constant 0 : i32
    %c0_i32_1 = arith.constant 0 : i32
    %c0_i32_2 = arith.constant 0 : i32
    return %c0_i32, %c0_i32_0, %c0_i32_1 : i32, i32, i32
  }
  func.func @transform_3(%arg0: i32) -> (i32, i32) {
    %c0_i32 = arith.constant 0 : i32
    %c0_i32_0 = arith.constant 0 : i32
    %c0_i32_1 = arith.constant 0 : i32
    return %c0_i32, %c0_i32_0 : i32, i32
  }
  func.func @transform_4(%arg0: i32) -> (i32, i32) {
    %c0_i32 = arith.constant 0 : i32
    %c0_i32_0 = arith.constant 0 : i32
    %c0_i32_1 = arith.constant 0 : i32
    return %c0_i32, %c0_i32_0 : i32, i32
  }
  func.func @transform_5(%arg0: i32) -> (i32, i32) {
    %c0_i32 = arith.constant 0 : i32
    %c0_i32_0 = arith.constant 0 : i32
    %c0_i32_1 = arith.constant 0 : i32
    return %c0_i32, %c0_i32_0 : i32, i32
  }
  func.func @transform_6(%arg0: i32) -> (i32, i32) {
    %c0_i32 = arith.constant 0 : i32
    %c0_i32_0 = arith.constant 0 : i32
    return %arg0, %c0_i32 : i32, i32
  }
}

</mosaic_0001>

<llo_original>
// kernel: tpu_custom_call.1
$region0: #{tpu_custom_call.1}
  #allocation0 [shape = 'u32[]', space=smem, size = 0x4, offset = 0x4, fixed_abs, tag = 'smem constant byte address 0x4 - core index']
  #allocation1 [shape = 'u32[144,128]{1,0:T(1,128)}', space=vmem, size = 0x12000, scoped, tag = 'internal scratch']
  #allocation2 [shape = 'f32[1,1]{1,0:T(1,128)S(6)}', space=smem, size = 0x200, scoped, tag = 'scoped memory for tpu_custom_call.1']
  %s0 = inlined_call_operand.hbm [shape: f32[8,8], index: 0, kind: input, shape index: {}]
  %s1 = inlined_call_operand.hbm [shape: bf16[8,256], index: 1, kind: input, shape index: {}]
  %s2 = inlined_call_operand.hbm [shape: bf16[2,256,256], index: 2, kind: input, shape index: {}]
  %s3 = inlined_call_operand.vmem [shape: f32[1,256], index: 3, kind: input, shape index: {}]
  %s4 = inlined_call_operand.vmem [shape: f32[3,256], index: 4, kind: input, shape index: {}]
  %s5 = inlined_call_operand.<no memory space> [shape: f32[1,1], index: 5, kind: input, shape index: {}]
  %s6 = inlined_call_operand.hbm [shape: f32[1,8], index: 6, kind: output, shape index: {}]
  %s7 = sld [smem:[#allocation0]]
  $region46: #{tpu_custom_call.1} parent=0
    _
  %s9 = ssub.s32 1, %s7
  %s10 = scalar_select 0, %s9, %s7
  %11 = sst [smem:[#allocation2]] %s5
  $region1: #{tpu_custom_call.1} parent=0
    #allocation3 [shape = 'u8[4096]{0}', space=vmem, size = 0x1000, scoped, tag = 'input window, operand 0, single buffered']
    #allocation4 [shape = 's32[1]{0}', space=sflag, size = 0x4, scoped, tag = 'scoped memory for tpu_custom_call.1']
    #allocation5 [shape = 's32[1]{0}', space=sflag, size = 0x4, scoped, tag = 'scoped memory for tpu_custom_call.1']
    #allocation6 [shape = 'u8[4096]{0}', space=vmem, size = 0x1000, scoped, tag = 'input window, operand 1, single buffered']
    #allocation7 [shape = 's32[1]{0}', space=sflag, size = 0x4, scoped, tag = 'scoped memory for tpu_custom_call.1']
    #allocation8 [shape = 'u8[262144]{0}', space=vmem, size = 0x40000, scoped, tag = 'input window, operand 2, single buffered']
    #allocation9 [shape = 'u8[512]{0}', space=vmem, size = 0x400, scoped, tag = 'output window, operand 0, single buffered']
    %12 = vsyncpa [#allocation4], 0
    %13 = vsyncpa [#allocation7], 0
    %14 = vsyncpa [#allocation5], 0
    // Predicated region
    $region2: #{tpu_custom_call.1} parent=1 // pred_check
      _
    $region3: #{tpu_custom_call.1} parent=1 // pred_check_branch
      %16 = sbr.rel (0) target = $region5
    $region4: #{tpu_custom_call.1} parent=1 // pred_region
      %s18 = ssub.s32 128, 128
      %19 = vsyncadd [#allocation4], %s18
      %s21 = sshll.u32 [#allocation3], 4
      %s22 = int_to_ptr.vmem [resolvable:$true] %s21
      %24 = dma.hbm_to_vmem [thread:$0]  %s0, 128, %s22, [#allocation4]
    $region5: #{tpu_custom_call.1} parent=1 // pred_fallthru
      _
    // Predicated region
    $region6: #{tpu_custom_call.1} parent=1 // pred_check
      _
    $region7: #{tpu_custom_call.1} parent=1 // pred_check_branch
      %26 = sbr.rel (0) target = $region9
    $region8: #{tpu_custom_call.1} parent=1 // pred_region
      %s28 = ssub.s32 128, 128
      %29 = vsyncadd [#allocation7], %s28
      %s31 = sshll.u32 [#allocation6], 4
      %s32 = int_to_ptr.vmem [resolvable:$true] %s31
      %34 = dma.hbm_to_vmem [thread:$0]  %s1, 128, %s32, [#allocation7]
    $region9: #{tpu_custom_call.1} parent=1 // pred_fallthru
      _
    // Predicated region
    $region10: #{tpu_custom_call.1} parent=1 // pred_check
      _
    $region11: #{tpu_custom_call.1} parent=1 // pred_check_branch
      %36 = sbr.rel (0) target = $region13
    $region12: #{tpu_custom_call.1} parent=1 // pred_region
      %s38 = ssub.s32 8192, 8192
      %39 = vsyncadd [#allocation7], %s38
      %s40 = sshll.u32 [#allocation8], 4
      %s41 = int_to_ptr.vmem [resolvable:$true] %s40
      %46 = dma.hbm_to_vmem [thread:$0]  %s2, 8192, %s41, [#allocation7], 128, 128, 8
    $region13: #{tpu_custom_call.1} parent=1 // pred_fallthru
      _
    // Predicated region
    $region14: #{tpu_custom_call.1} parent=1 // pred_check
      _
    $region15: #{tpu_custom_call.1} parent=1 // pred_check_branch
      %48 = sbr.rel (0) target = $region17
    $region16: #{tpu_custom_call.1} parent=1 // pred_region
      _
    $region17: #{tpu_custom_call.1} parent=1 // pred_fallthru
      _
    // Predicated region
    $region18: #{tpu_custom_call.1} parent=1 // pred_check
      _
    $region19: #{tpu_custom_call.1} parent=1 // pred_check_branch
      %50 = sbr.rel (0) target = $region21
    $region20: #{tpu_custom_call.1} parent=1 // pred_region
      _
    $region21: #{tpu_custom_call.1} parent=1 // pred_fallthru
      _
    // Predicated region
    $region22: #{tpu_custom_call.1} parent=1 // pred_check
      _
    $region23: #{tpu_custom_call.1} parent=1 // pred_check_branch
      %52 = sbr.rel (0) target = $region25
    $region24: #{tpu_custom_call.1} parent=1 // pred_region
      _
    $region25: #{tpu_custom_call.1} parent=1 // pred_fallthru
      _
    // Predicated region
    $region26: #{tpu_custom_call.1} parent=1 // pred_check
      _
    $region27: #{tpu_custom_call.1} parent=1 // pred_check_branch
      %54 = sbr.rel (0) target = $region29
    $region28: #{tpu_custom_call.1} parent=1 // pred_region
      %55 = dma.done [#allocation4], 128
    $region29: #{tpu_custom_call.1} parent=1 // pred_fallthru
      _
    // Predicated region
    $region30: #{tpu_custom_call.1} parent=1 // pred_check
      _
    $region31: #{tpu_custom_call.1} parent=1 // pred_check_branch
      %57 = sbr.rel (0) target = $region33
    $region32: #{tpu_custom_call.1} parent=1 // pred_region
      %58 = dma.done [#allocation7], 128
    $region33: #{tpu_custom_call.1} parent=1 // pred_fallthru
      _
    // Predicated region
    $region34: #{tpu_custom_call.1} parent=1 // pred_check
      _
    $region35: #{tpu_custom_call.1} parent=1 // pred_check_branch
      %60 = sbr.rel (0) target = $region37
    $region36: #{tpu_custom_call.1} parent=1 // pred_region
      %61 = dma.done [#allocation7], 8192
    $region37: #{tpu_custom_call.1} parent=1 // pred_fallthru
      _
    %v63 = vld [vmem:[#allocation3] sm:$0xff]
    %v64 = vpack.c.bf16 %v63, %v63
    %v65 = vld [vmem:[#allocation6] sm:$0xff]
    %v66 = vld [vmem:[%s4] ss:$4 sm:$0x3]
    %v68 = vlaneseq
    %v69 = vshrl.u32 %v68, 7
    %v70 = vsub.s32 0, %v69
    %v71 = vrot.slane %v66, %v70
    %v72 = vlaneseq
    %v73 = vshrl.u32 %v72, 7
    %v74 = vsub.s32 1, %v73
    %v75 = vrot.slane %v66, %v74
    %v79 = vunpack.c.l.b16 %v65
    %v80 = vunpack.c.h.b16 %v65
    %v81 = vpack.c.b16 %v79, %v79
    %v82 = vpack.c.b16 %v80, %v80
    %vm83 = vcmask 64512
    %v85 = vsel %vm83, %v64, 0
    %vm87 = vcmask 1043456
    %v89 = vsel %vm87, %v81, 0
    %v92 = vsel %vm87, %v82, 0
    %94 = vmatprep.subr.bf16.mxu0 %v92
    %95 = vmatpush1.bf16.msra.mxu0 %v89
    %96 = vmatprep.subr.bf16.mxu0 0
    %97 = vmatpush1.bf16.msra.mxu0 0
    %98 = vmatprep.subr.bf16.mxu0 0
    %99 = vmatpush1.bf16.msra.mxu0 0
    %100 = vmatprep.subr.bf16.mxu0 0
    %101 = vmatpush1.bf16.msra.mxu0 0
    %102 = vmatprep.subr.bf16.mxu0 0
    %103 = vmatpush1.bf16.msra.mxu0 0
    %104 = vmatprep.subr.bf16.mxu0 0
    %105 = vmatpush1.bf16.msra.mxu0 0
    %106 = vmatprep.subr.bf16.mxu0 0
    %107 = vmatpush1.bf16.msra.mxu0 0
    %108 = vmatprep.subr.bf16.mxu0 0
    %109 = vmatpush1.bf16.msra.mxu0 0
    %110 = vmatprep.subr.bf16.mxu0 0
    %111 = vmatpush1.bf16.msra.mxu0 0
    %112 = vmatprep.subr.bf16.mxu0 0
    %113 = vmatpush1.bf16.msra.mxu0 0
    %114 = vmatprep.subr.bf16.mxu0 0
    %115 = vmatpush1.bf16.msra.mxu0 0
    %116 = vmatprep.subr.bf16.mxu0 0
    %117 = vmatpush1.bf16.msra.mxu0 0
    %118 = vmatprep.subr.bf16.mxu0 0
    %119 = vmatpush1.bf16.msra.mxu0 0
    %120 = vmatprep.subr.bf16.mxu0 0
    %121 = vmatpush1.bf16.msra.mxu0 0
    %122 = vmatprep.subr.bf16.mxu0 0
    %123 = vmatpush1.bf16.msra.mxu0 0
    %124 = vmatprep.subr.bf16.mxu0 0
    %125 = vmatpush1.bf16.msra.mxu0 0
    %126 = vmatprep.mubr.bf16.mxu0 0
    %127 = vmatmul.mubr.bf16.gmra.mrb[0].mxu0 %v85
    %v128 = vpop.f32.mrb[0].mxu0
    %v129 = vadd.f32 %v71, %v128
    %v130 = vpop.f32.mrb[0].mxu0
    %v131 = vadd.f32 %v75, %v130
    %v132 = vpop.f32.mrb[0].mxu0
    %v133 = vpop.f32.mrb[0].mxu0
    %134 = vdwg.mxu0
    %v135 = vpack.c.bf16 %v129, %v129
    %v136 = vpack.c.bf16 %v131, %v131
    %v137 = vmax.bf16 %v135, 0
    %v138 = vmax.bf16 %v136, 0
    %v139 = vld [vmem:[#allocation8] sm:$0xff]
    %v140 = vld [vmem:[#allocation8 + $0x8] sm:$0xff]
    %v141 = vld [vmem:[#allocation8 + $0x10] sm:$0xff]
    %v142 = vld [vmem:[#allocation8 + $0x18] sm:$0xff]
    %v143 = vld [vmem:[#allocation8 + $0x20] sm:$0xff]
    %v144 = vld [vmem:[#allocation8 + $0x28] sm:$0xff]
    %v145 = vld [vmem:[#allocation8 + $0x30] sm:$0xff]
    %v146 = vld [vmem:[#allocation8 + $0x38] sm:$0xff]
    %v147 = vld [vmem:[#allocation8 + $0x40] sm:$0xff]
    %v148 = vld [vmem:[#allocation8 + $0x48] sm:$0xff]
    %v149 = vld [vmem:[#allocation8 + $0x50] sm:$0xff]
    %v150 = vld [vmem:[#allocation8 + $0x58] sm:$0xff]
    %v151 = vld [vmem:[#allocation8 + $0x60] sm:$0xff]
    %v152 = vld [vmem:[#allocation8 + $0x68] sm:$0xff]
    %v153 = vld [vmem:[#allocation8 + $0x70] sm:$0xff]
    %v154 = vld [vmem:[#allocation8 + $0x78] sm:$0xff]
    %v155 = vld [vmem:[#allocation8 + $0x80] sm:$0xff]
    %v156 = vld [vmem:[#allocation8 + $0x88] sm:$0xff]
    %v157 = vld [vmem:[#allocation8 + $0x90] sm:$0xff]
    %v158 = vld [vmem:[#allocation8 + $0x98] sm:$0xff]
    %v159 = vld [vmem:[#allocation8 + $0xa0] sm:$0xff]
    %v160 = vld [vmem:[#allocation8 + $0xa8] sm:$0xff]
    %v161 = vld [vmem:[#allocation8 + $0xb0] sm:$0xff]
    %v162 = vld [vmem:[#allocation8 + $0xb8] sm:$0xff]
    %v163 = vld [vmem:[#allocation8 + $0xc0] sm:$0xff]
    %v164 = vld [vmem:[#allocation8 + $0xc8] sm:$0xff]
    %v165 = vld [vmem:[#allocation8 + $0xd0] sm:$0xff]
    %v166 = vld [vmem:[#allocation8 + $0xd8] sm:$0xff]
    %v167 = vld [vmem:[#allocation8 + $0xe0] sm:$0xff]
    %v168 = vld [vmem:[#allocation8 + $0xe8] sm:$0xff]
    %v169 = vld [vmem:[#allocation8 + $0xf0] sm:$0xff]
    %v170 = vld [vmem:[#allocation8 + $0xf8] sm:$0xff]
    %s171 = scalar_lea.vmem %s4, 1
    %v172 = vld [vmem:[%s171] ss:$4 sm:$0x3]
    %v174 = vlaneseq
    %v175 = vshrl.u32 %v174, 7
    %v176 = vsub.s32 0, %v175
    %v177 = vrot.slane %v172, %v176
    %v178 = vlaneseq
    %v179 = vshrl.u32 %v178, 7
    %v180 = vsub.s32 1, %v179
    %v181 = vrot.slane %v172, %v180
    %v216 = vunpack.c.l.b16 %v139
    %v217 = vunpack.c.h.b16 %v139
    %v218 = vunpack.c.l.b16 %v140
    %v219 = vunpack.c.h.b16 %v140
    %v220 = vunpack.c.l.b16 %v141
    %v221 = vunpack.c.h.b16 %v141
    %v222 = vunpack.c.l.b16 %v142
    %v223 = vunpack.c.h.b16 %v142
    %v224 = vunpack.c.l.b16 %v143
    %v225 = vunpack.c.h.b16 %v143
    %v226 = vunpack.c.l.b16 %v144
    %v227 = vunpack.c.h.b16 %v144
    %v228 = vunpack.c.l.b16 %v145
    %v229 = vunpack.c.h.b16 %v145
    %v230 = vunpack.c.l.b16 %v146
    %v231 = vunpack.c.h.b16 %v146
    %v232 = vunpack.c.l.b16 %v147
    %v233 = vunpack.c.h.b16 %v147
    %v234 = vunpack.c.l.b16 %v148
    %v235 = vunpack.c.h.b16 %v148
    %v236 = vunpack.c.l.b16 %v149
    %v237 = vunpack.c.h.b16 %v149
    %v238 = vunpack.c.l.b16 %v150
    %v239 = vunpack.c.h.b16 %v150
    %v240 = vunpack.c.l.b16 %v151
    %v241 = vunpack.c.h.b16 %v151
    %v242 = vunpack.c.l.b16 %v152
    %v243 = vunpack.c.h.b16 %v152
    %v244 = vunpack.c.l.b16 %v153
    %v245 = vunpack.c.h.b16 %v153
    %v246 = vunpack.c.l.b16 %v154
    %v247 = vunpack.c.h.b16 %v154
    %v248 = vunpack.c.l.b16 %v155
    %v249 = vunpack.c.h.b16 %v155
    %v250 = vunpack.c.l.b16 %v156
    %v251 = vunpack.c.h.b16 %v156
    %v252 = vunpack.c.l.b16 %v157
    %v253 = vunpack.c.h.b16 %v157
    %v254 = vunpack.c.l.b16 %v158
    %v255 = vunpack.c.h.b16 %v158
    %v256 = vunpack.c.l.b16 %v159
    %v257 = vunpack.c.h.b16 %v159
    %v258 = vunpack.c.l.b16 %v160
    %v259 = vunpack.c.h.b16 %v160
    %v260 = vunpack.c.l.b16 %v161
    %v261 = vunpack.c.h.b16 %v161
    %v262 = vunpack.c.l.b16 %v162
    %v263 = vunpack.c.h.b16 %v162
    %v264 = vunpack.c.l.b16 %v163
    %v265 = vunpack.c.h.b16 %v163
    %v266 = vunpack.c.l.b16 %v164
    %v267 = vunpack.c.h.b16 %v164
    %v268 = vunpack.c.l.b16 %v165
    %v269 = vunpack.c.h.b16 %v165
    %v270 = vunpack.c.l.b16 %v166
    %v271 = vunpack.c.h.b16 %v166
    %v272 = vunpack.c.l.b16 %v167
    %v273 = vunpack.c.h.b16 %v167
    %v274 = vunpack.c.l.b16 %v168
    %v275 = vunpack.c.h.b16 %v168
    %v276 = vunpack.c.l.b16 %v169
    %v277 = vunpack.c.h.b16 %v169
    %v278 = vunpack.c.l.b16 %v170
    %v279 = vunpack.c.h.b16 %v170
    %v280 = vpack.c.b16 %v218, %v216
    %v281 = vpack.c.b16 %v219, %v217
    %v282 = vpack.c.b16 %v222, %v220
    %v283 = vpack.c.b16 %v223, %v221
    %v284 = vpack.c.b16 %v226, %v224
    %v285 = vpack.c.b16 %v227, %v225
    %v286 = vpack.c.b16 %v230, %v228
    %v287 = vpack.c.b16 %v231, %v229
    %v288 = vpack.c.b16 %v234, %v232
    %v289 = vpack.c.b16 %v235, %v233
    %v290 = vpack.c.b16 %v238, %v236
    %v291 = vpack.c.b16 %v239, %v237
    %v292 = vpack.c.b16 %v242, %v240
    %v293 = vpack.c.b16 %v243, %v241
    %v294 = vpack.c.b16 %v246, %v244
    %v295 = vpack.c.b16 %v247, %v245
    %v296 = vpack.c.b16 %v250, %v248
    %v297 = vpack.c.b16 %v251, %v249
    %v298 = vpack.c.b16 %v254, %v252
    %v299 = vpack.c.b16 %v255, %v253
    %v300 = vpack.c.b16 %v258, %v256
    %v301 = vpack.c.b16 %v259, %v257
    %v302 = vpack.c.b16 %v262, %v260
    %v303 = vpack.c.b16 %v263, %v261
    %v304 = vpack.c.b16 %v266, %v264
    %v305 = vpack.c.b16 %v267, %v265
    %v306 = vpack.c.b16 %v270, %v268
    %v307 = vpack.c.b16 %v271, %v269
    %v308 = vpack.c.b16 %v274, %v272
    %v309 = vpack.c.b16 %v275, %v273
    %v310 = vpack.c.b16 %v278, %v276
    %v311 = vpack.c.b16 %v279, %v277
    %344 = vmatprep.subr.bf16.mxu0 %v281
    %345 = vmatpush1.bf16.msra.mxu0 %v280
    %346 = vmatprep.subr.bf16.mxu0 %v283
    %347 = vmatpush1.bf16.msra.mxu0 %v282
    %348 = vmatprep.subr.bf16.mxu0 %v285
    %349 = vmatpush1.bf16.msra.mxu0 %v284
    %350 = vmatprep.subr.bf16.mxu0 %v287
    %351 = vmatpush1.bf16.msra.mxu0 %v286
    %352 = vmatprep.subr.bf16.mxu0 %v289
    %353 = vmatpush1.bf16.msra.mxu0 %v288
    %354 = vmatprep.subr.bf16.mxu0 %v291
    %355 = vmatpush1.bf16.msra.mxu0 %v290
    %356 = vmatprep.subr.bf16.mxu0 %v293
    %357 = vmatpush1.bf16.msra.mxu0 %v292
    %358 = vmatprep.subr.bf16.mxu0 %v295
    %359 = vmatpush1.bf16.msra.mxu0 %v294
    %360 = vmatprep.subr.bf16.mxu0 %v297
    %361 = vmatpush1.bf16.msra.mxu0 %v296
    %362 = vmatprep.subr.bf16.mxu0 %v299
    %363 = vmatpush1.bf16.msra.mxu0 %v298
    %364 = vmatprep.subr.bf16.mxu0 %v301
    %365 = vmatpush1.bf16.msra.mxu0 %v300
    %366 = vmatprep.subr.bf16.mxu0 %v303
    %367 = vmatpush1.bf16.msra.mxu0 %v302
    %368 = vmatprep.subr.bf16.mxu0 %v305
    %369 = vmatpush1.bf16.msra.mxu0 %v304
    %370 = vmatprep.subr.bf16.mxu0 %v307
    %371 = vmatpush1.bf16.msra.mxu0 %v306
    %372 = vmatprep.subr.bf16.mxu0 %v309
    %373 = vmatpush1.bf16.msra.mxu0 %v308
    %374 = vmatprep.subr.bf16.mxu0 %v311
    %375 = vmatpush1.bf16.msra.mxu0 %v310
    %376 = vmatprep.mubr.bf16.mxu0 %v138
    %377 = vmatmul.mubr.bf16.gmra.mrb[0].mxu0 %v137
    %v378 = vpop.f32.mrb[0].mxu0
    %v379 = vadd.f32 %v177, %v378
    %v380 = vpop.f32.mrb[0].mxu0
    %v381 = vadd.f32 %v181, %v380
    %v382 = vpop.f32.mrb[0].mxu0
    %v383 = vpop.f32.mrb[0].mxu0
    %384 = vdwg.mxu0
    %v385 = vpack.c.bf16 %v379, %v379
    %v386 = vpack.c.bf16 %v381, %v381
    %v387 = vmax.bf16 %v385, 0
    %v388 = vmax.bf16 %v386, 0
    %s389 = scalar_lea.vmem [#allocation8], 256
    %v390 = vld [vmem:[%s389] sm:$0xff]
    %v391 = vld [vmem:[%s389 + $0x8] sm:$0xff]
    %v392 = vld [vmem:[%s389 + $0x10] sm:$0xff]
    %v393 = vld [vmem:[%s389 + $0x18] sm:$0xff]
    %v394 = vld [vmem:[%s389 + $0x20] sm:$0xff]
    %v395 = vld [vmem:[%s389 + $0x28] sm:$0xff]
    %v396 = vld [vmem:[%s389 + $0x30] sm:$0xff]
    %v397 = vld [vmem:[%s389 + $0x38] sm:$0xff]
    %v398 = vld [vmem:[%s389 + $0x40] sm:$0xff]
    %v399 = vld [vmem:[%s389 + $0x48] sm:$0xff]
    %v400 = vld [vmem:[%s389 + $0x50] sm:$0xff]
    %v401 = vld [vmem:[%s389 + $0x58] sm:$0xff]
    %v402 = vld [vmem:[%s389 + $0x60] sm:$0xff]
    %v403 = vld [vmem:[%s389 + $0x68] sm:$0xff]
    %v404 = vld [vmem:[%s389 + $0x70] sm:$0xff]
    %v405 = vld [vmem:[%s389 + $0x78] sm:$0xff]
    %v406 = vld [vmem:[%s389 + $0x80] sm:$0xff]
    %v407 = vld [vmem:[%s389 + $0x88] sm:$0xff]
    %v408 = vld [vmem:[%s389 + $0x90] sm:$0xff]
    %v409 = vld [vmem:[%s389 + $0x98] sm:$0xff]
    %v410 = vld [vmem:[%s389 + $0xa0] sm:$0xff]
    %v411 = vld [vmem:[%s389 + $0xa8] sm:$0xff]
    %v412 = vld [vmem:[%s389 + $0xb0] sm:$0xff]
    %v413 = vld [vmem:[%s389 + $0xb8] sm:$0xff]
    %v414 = vld [vmem:[%s389 + $0xc0] sm:$0xff]
    %v415 = vld [vmem:[%s389 + $0xc8] sm:$0xff]
    %v416 = vld [vmem:[%s389 + $0xd0] sm:$0xff]
    %v417 = vld [vmem:[%s389 + $0xd8] sm:$0xff]
    %v418 = vld [vmem:[%s389 + $0xe0] sm:$0xff]
    %v419 = vld [vmem:[%s389 + $0xe8] sm:$0xff]
    %v420 = vld [vmem:[%s389 + $0xf0] sm:$0xff]
    %v421 = vld [vmem:[%s389 + $0xf8] sm:$0xff]
    %s422 = scalar_lea.vmem %s4, 2
    %v423 = vld [vmem:[%s422] ss:$4 sm:$0x3]
    %v425 = vlaneseq
    %v426 = vshrl.u32 %v425, 7
    %v427 = vsub.s32 0, %v426
    %v428 = vrot.slane %v423, %v427
    %v429 = vlaneseq
    %v430 = vshrl.u32 %v429, 7
    %v431 = vsub.s32 1, %v430
    %v432 = vrot.slane %v423, %v431
    %v467 = vunpack.c.l.b16 %v390
    %v468 = vunpack.c.h.b16 %v390
    %v469 = vunpack.c.l.b16 %v391
    %v470 = vunpack.c.h.b16 %v391
    %v471 = vunpack.c.l.b16 %v392
    %v472 = vunpack.c.h.b16 %v392
    %v473 = vunpack.c.l.b16 %v393
    %v474 = vunpack.c.h.b16 %v393
    %v475 = vunpack.c.l.b16 %v394
    %v476 = vunpack.c.h.b16 %v394
    %v477 = vunpack.c.l.b16 %v395
    %v478 = vunpack.c.h.b16 %v395
    %v479 = vunpack.c.l.b16 %v396
    %v480 = vunpack.c.h.b16 %v396
    %v481 = vunpack.c.l.b16 %v397
    %v482 = vunpack.c.h.b16 %v397
    %v483 = vunpack.c.l.b16 %v398
    %v484 = vunpack.c.h.b16 %v398
    %v485 = vunpack.c.l.b16 %v399
    %v486 = vunpack.c.h.b16 %v399
    %v487 = vunpack.c.l.b16 %v400
    %v488 = vunpack.c.h.b16 %v400
    %v489 = vunpack.c.l.b16 %v401
    %v490 = vunpack.c.h.b16 %v401
    %v491 = vunpack.c.l.b16 %v402
    %v492 = vunpack.c.h.b16 %v402
    %v493 = vunpack.c.l.b16 %v403
    %v494 = vunpack.c.h.b16 %v403
    %v495 = vunpack.c.l.b16 %v404
    %v496 = vunpack.c.h.b16 %v404
    %v497 = vunpack.c.l.b16 %v405
    %v498 = vunpack.c.h.b16 %v405
    %v499 = vunpack.c.l.b16 %v406
    %v500 = vunpack.c.h.b16 %v406
    %v501 = vunpack.c.l.b16 %v407
    %v502 = vunpack.c.h.b16 %v407
    %v503 = vunpack.c.l.b16 %v408
    %v504 = vunpack.c.h.b16 %v408
    %v505 = vunpack.c.l.b16 %v409
    %v506 = vunpack.c.h.b16 %v409
    %v507 = vunpack.c.l.b16 %v410
    %v508 = vunpack.c.h.b16 %v410
    %v509 = vunpack.c.l.b16 %v411
    %v510 = vunpack.c.h.b16 %v411
    %v511 = vunpack.c.l.b16 %v412
    %v512 = vunpack.c.h.b16 %v412
    %v513 = vunpack.c.l.b16 %v413
    %v514 = vunpack.c.h.b16 %v413
    %v515 = vunpack.c.l.b16 %v414
    %v516 = vunpack.c.h.b16 %v414
    %v517 = vunpack.c.l.b16 %v415
    %v518 = vunpack.c.h.b16 %v415
    %v519 = vunpack.c.l.b16 %v416
    %v520 = vunpack.c.h.b16 %v416
    %v521 = vunpack.c.l.b16 %v417
    %v522 = vunpack.c.h.b16 %v417
    %v523 = vunpack.c.l.b16 %v418
    %v524 = vunpack.c.h.b16 %v418
    %v525 = vunpack.c.l.b16 %v419
    %v526 = vunpack.c.h.b16 %v419
    %v527 = vunpack.c.l.b16 %v420
    %v528 = vunpack.c.h.b16 %v420
    %v529 = vunpack.c.l.b16 %v421
    %v530 = vunpack.c.h.b16 %v421
    %v531 = vpack.c.b16 %v469, %v467
    %v532 = vpack.c.b16 %v470, %v468
    %v533 = vpack.c.b16 %v473, %v471
    %v534 = vpack.c.b16 %v474, %v472
    %v535 = vpack.c.b16 %v477, %v475
    %v536 = vpack.c.b16 %v478, %v476
    %v537 = vpack.c.b16 %v481, %v479
    %v538 = vpack.c.b16 %v482, %v480
    %v539 = vpack.c.b16 %v485, %v483
    %v540 = vpack.c.b16 %v486, %v484
    %v541 = vpack.c.b16 %v489, %v487
    %v542 = vpack.c.b16 %v490, %v488
    %v543 = vpack.c.b16 %v493, %v491
    %v544 = vpack.c.b16 %v494, %v492
    %v545 = vpack.c.b16 %v497, %v495
    %v546 = vpack.c.b16 %v498, %v496
    %v547 = vpack.c.b16 %v501, %v499
    %v548 = vpack.c.b16 %v502, %v500
    %v549 = vpack.c.b16 %v505, %v503
    %v550 = vpack.c.b16 %v506, %v504
    %v551 = vpack.c.b16 %v509, %v507
    %v552 = vpack.c.b16 %v510, %v508
    %v553 = vpack.c.b16 %v513, %v511
    %v554 = vpack.c.b16 %v514, %v512
    %v555 = vpack.c.b16 %v517, %v515
    %v556 = vpack.c.b16 %v518, %v516
    %v557 = vpack.c.b16 %v521, %v519
    %v558 = vpack.c.b16 %v522, %v520
    %v559 = vpack.c.b16 %v525, %v523
    %v560 = vpack.c.b16 %v526, %v524
    %v561 = vpack.c.b16 %v529, %v527
    %v562 = vpack.c.b16 %v530, %v528
    %595 = vmatprep.subr.bf16.mxu0 %v532
    %596 = vmatpush1.bf16.msra.mxu0 %v531
    %597 = vmatprep.subr.bf16.mxu0 %v534
    %598 = vmatpush1.bf16.msra.mxu0 %v533
    %599 = vmatprep.subr.bf16.mxu0 %v536
    %600 = vmatpush1.bf16.msra.mxu0 %v535
    %601 = vmatprep.subr.bf16.mxu0 %v538
    %602 = vmatpush1.bf16.msra.mxu0 %v537
    %603 = vmatprep.subr.bf16.mxu0 %v540
    %604 = vmatpush1.bf16.msra.mxu0 %v539
    %605 = vmatprep.subr.bf16.mxu0 %v542
    %606 = vmatpush1.bf16.msra.mxu0 %v541
    %607 = vmatprep.subr.bf16.mxu0 %v544
    %608 = vmatpush1.bf16.msra.mxu0 %v543
    %609 = vmatprep.subr.bf16.mxu0 %v546
    %610 = vmatpush1.bf16.msra.mxu0 %v545
    %611 = vmatprep.subr.bf16.mxu0 %v548
    %612 = vmatpush1.bf16.msra.mxu0 %v547
    %613 = vmatprep.subr.bf16.mxu0 %v550
    %614 = vmatpush1.bf16.msra.mxu0 %v549
    %615 = vmatprep.subr.bf16.mxu0 %v552
    %616 = vmatpush1.bf16.msra.mxu0 %v551
    %617 = vmatprep.subr.bf16.mxu0 %v554
    %618 = vmatpush1.bf16.msra.mxu0 %v553
    %619 = vmatprep.subr.bf16.mxu0 %v556
    %620 = vmatpush1.bf16.msra.mxu0 %v555
    %621 = vmatprep.subr.bf16.mxu0 %v558
    %622 = vmatpush1.bf16.msra.mxu0 %v557
    %623 = vmatprep.subr.bf16.mxu0 %v560
    %624 = vmatpush1.bf16.msra.mxu0 %v559
    %625 = vmatprep.subr.bf16.mxu0 %v562
    %626 = vmatpush1.bf16.msra.mxu0 %v561
    %627 = vmatprep.mubr.bf16.mxu0 %v388
    %628 = vmatmul.mubr.bf16.gmra.mrb[0].mxu0 %v387
    %v629 = vpop.f32.mrb[0].mxu0
    %v630 = vadd.f32 %v428, %v629
    %v631 = vpop.f32.mrb[0].mxu0
    %v632 = vadd.f32 %v432, %v631
    %v633 = vpop.f32.mrb[0].mxu0
    %v634 = vpop.f32.mrb[0].mxu0
    %635 = vdwg.mxu0
    %v636 = vmax.f32 %v630, 0.0
    %v637 = vmax.f32 %v632, 0.0
    %v638 = vld [vmem:[%s3] sm:$0x3]
    %v640 = vlaneseq
    %v641 = vshrl.u32 %v640, 7
    %v642 = vsub.s32 0, %v641
    %v643 = vrot.slane %v638, %v642
    %v644 = vlaneseq
    %v645 = vshrl.u32 %v644, 7
    %v646 = vsub.s32 1, %v645
    %v647 = vrot.slane %v638, %v646
    %v650 = vmul.f32 %v636, %v643
    %v651 = vmul.f32 %v637, %v647
    %v652 = vadd.f32 %v650, %v651
    %653 = vadd.xlane.f32.xlu0 %v652
    %v654 = vpop.xlane.xlu0 %653
    %s655 = sld [smem:[#allocation2]]
    %v656 = vstv %s655
    %v657 = vadd.f32 %v654, %v656
    %v659 = vlaneseq
    %v660 = vand.u32 %v659, 127
    %v661 = vlaneseq
    %v662 = vshrl.u32 %v661, 7
    %v663 = vsub.s32 %v660, %v662
    %v664 = vrot.slane %v657, %v663
    %vm666 = vcmask 57344
    %667 = vst.msk [vmem:[#allocation9] sm:$0x1] %vm666, %v664
    // Predicated region
    $region38: #{tpu_custom_call.1} parent=1 // pred_check
      _
    $region39: #{tpu_custom_call.1} parent=1 // pred_check_branch
      %669 = sbr.rel (0) target = $region41
    $region40: #{tpu_custom_call.1} parent=1 // pred_region
      %s671 = ssub.s32 16, 16
      %672 = vsyncadd [#allocation5], %s671
      %s674 = sshll.u32 [#allocation9], 4
      %s675 = int_to_ptr.vmem [resolvable:$true] %s674
      %677 = dma.vmem_to_hbm [thread:$0]  %s675, 16, %s6, [#allocation5]
    $region41: #{tpu_custom_call.1} parent=1 // pred_fallthru
      _
    // Predicated region
    $region42: #{tpu_custom_call.1} parent=1 // pred_check
      _
    $region43: #{tpu_custom_call.1} parent=1 // pred_check_branch
      %679 = sbr.rel (0) target = $region45
    $region44: #{tpu_custom_call.1} parent=1 // pred_region
      %680 = dma.done [#allocation5], 16
    $region45: #{tpu_custom_call.1} parent=1 // pred_fallthru
      _
    %681 = vsyncpa [#allocation4], 1
    %682 = vsyncpa [#allocation7], 1
    %683 = vsyncpa [#allocation5], 1

</llo_original>
